<compile_context>
chip_gen: v5e
topology: v5e:2x2
jax: 0.10.0
libtpu: 0.0.40
codegen_flags: <defaults>
</compile_context>

<pallas_src>
import functools

import jax
import jax.numpy as jnp
from jax import lax
from jax.experimental import pallas as pl
from jax.experimental.pallas import tpu as pltpu


def _bottleneck_kernel(L, x_ref, w1_ref, b1_ref, w2l_ref, w2c_ref, w2r_ref,
                       b2_ref, w3_ref, ws_ref, bc_ref, o_ref):
    """One batch tile per grid step.  x_ref block is (C_in, TB*L), bf16."""
    x = x_ref[...]                                                  # (C_in, TL) bf16
    tl = x.shape[-1]

    # ---- conv1 (k=1, bias=False) + BN1 (scale folded into w1) + ReLU ----
    h1 = jnp.dot(w1_ref[...], x, preferred_element_type=jnp.float32)     # (Cb, TL) f32
    h1 = jnp.maximum(h1 + b1_ref[...], 0.0)

    # ---- conv2 (k=3, pad=1, stride=1) + BN2 + ReLU : three per-tap dots ----
    # Shifted copies along the folded lane axis (XLU roll).  The iota-derived
    # predicates zero every per-sample boundary (pos % L == 0 / L-1), which is
    # exactly the conv's zero padding for every sample in the folded tile.
    pos = lax.broadcasted_iota(jnp.int32, (1, tl), 1)
    rem = lax.rem(pos, jnp.int32(L))
    h_left = jnp.where(rem != 0, pltpu.roll(h1, shift=1, axis=1), 0.0)          # h1[:, l-1]
    h_right = jnp.where(rem != L - 1, pltpu.roll(h1, shift=tl - 1, axis=1), 0.0)  # h1[:, l+1]
    h2 = (jnp.dot(w2l_ref[...], h_left.astype(jnp.bfloat16),
                  preferred_element_type=jnp.float32)
          + jnp.dot(w2c_ref[...], h1.astype(jnp.bfloat16),
                    preferred_element_type=jnp.float32)
          + jnp.dot(w2r_ref[...], h_right.astype(jnp.bfloat16),
                    preferred_element_type=jnp.float32))                        # (Cb, TL)
    h2 = jnp.maximum(h2 + b2_ref[...], 0.0)

    # ---- conv3 + BN3 and projection shortcut (conv1x1 + BN): two dots summed ----
    out = (jnp.dot(w3_ref[...], h2.astype(jnp.bfloat16),
                   preferred_element_type=jnp.float32)
           + jnp.dot(ws_ref[...], x, preferred_element_type=jnp.float32))       # (C_out, TL)
    o_ref[...] = jnp.maximum(out + bc_ref[...], 0.0).astype(o_ref.dtype)


def _default_batch_tile(N):
    """One big block on single-TC parts (v5e/v6e); two big blocks on dual-TC v7x."""
    try:
        kind = jax.devices()[0].device_kind.lower()
    except Exception:  # pragma: no cover - defensive
        kind = ""
    if "v7" in kind and N % 2 == 0:
        return N // 2
    return N


def bottleneck_conv1d_block_cm(x_cm, w1f, b1, w2l, w2c, w2r, b2, w3f, wsf, bc, *,
                               L, batch_tile=None, out_dtype=jnp.float32):
    """Channel-major entry point: x_cm is (C_in, N*L) bf16 -> (C_out, N*L).

    Stacked blocks should keep this layout between calls (transpose only once
    at network entry/exit)."""
    C_in, NL = x_cm.shape
    N = NL // L
    C_out = w3f.shape[0]
    if batch_tile is None:
        batch_tile = _default_batch_tile(N)
    assert N % batch_tile == 0, (N, batch_tile)
    tl = batch_tile * L

    def const_spec(shape):
        nd = len(shape)
        return pl.BlockSpec(shape, lambda g, _nd=nd: (0,) * _nd)

    grid_spec = pltpu.PrefetchScalarGridSpec(
        num_scalar_prefetch=0,
        grid=(N // batch_tile,),
        in_specs=[
            pl.BlockSpec((C_in, tl), lambda g: (0, g)),
            const_spec(w1f.shape), const_spec(b1.shape),
            const_spec(w2l.shape), const_spec(w2c.shape), const_spec(w2r.shape),
            const_spec(b2.shape),
            const_spec(w3f.shape), const_spec(wsf.shape), const_spec(bc.shape),
        ],
        out_specs=pl.BlockSpec((C_out, tl), lambda g: (0, g)),
    )
    return pl.pallas_call(
        functools.partial(_bottleneck_kernel, L),
        out_shape=jax.ShapeDtypeStruct((C_out, NL), out_dtype),
        grid_spec=grid_spec,
        compiler_params=pltpu.CompilerParams(
            dimension_semantics=("parallel",)),
    )(x_cm, w1f, b1, w2l, w2c, w2r, b2, w3f, wsf, bc)


def bottleneck_conv1d_block(x, params, *, batch_tile=None, out_dtype=jnp.float32):
    """NCL wrapper: x is (N, C_in, L) f32.  The transpose/cast here is a one-time
    layout shuffle; stacked blocks should call bottleneck_conv1d_block_cm."""
    N, C_in, L = x.shape
    x_cm = jnp.transpose(x, (1, 0, 2)).reshape(C_in, N * L).astype(jnp.bfloat16)
    out_cm = bottleneck_conv1d_block_cm(x_cm, *params, L=L, batch_tile=batch_tile,
                                        out_dtype=out_dtype)
    C_out = out_cm.shape[0]
    return out_cm.reshape(C_out, N, L).transpose(1, 0, 2)


# ---------------------------- host-side parameter packaging ----------------------------
def _fold_bn(p, eps=1e-5):
    gamma, beta, mean, var = p
    scale = gamma / jnp.sqrt(var + eps)
    bias = beta - mean * scale
    return scale[:, None].astype(jnp.float32), bias[:, None].astype(jnp.float32)


def pack_params(w1_full, bn1, w2_full, bn2, w3_full, bn3, ws_full, bns, eps=1e-5):
    """Fold BN (inference mode) into conv weights; split conv2 taps and the
    conv3/shortcut weights so the kernel needs no sublane concats."""
    s1, b1 = _fold_bn(bn1, eps)
    s2, b2 = _fold_bn(bn2, eps)
    s3, b3 = _fold_bn(bn3, eps)
    ss, bs = _fold_bn(bns, eps)
    w1f = (s1 * w1_full[:, :, 0]).astype(jnp.bfloat16)        # (Cb, C_in)
    w2l = (s2 * w2_full[:, :, 0]).astype(jnp.bfloat16)        # tap on h[l-1]
    w2c = (s2 * w2_full[:, :, 1]).astype(jnp.bfloat16)        # tap on h[l]
    w2r = (s2 * w2_full[:, :, 2]).astype(jnp.bfloat16)        # tap on h[l+1]
    w3f = (s3 * w3_full[:, :, 0]).astype(jnp.bfloat16)        # (C_out, Cb)
    wsf = (ss * ws_full[:, :, 0]).astype(jnp.bfloat16)        # (C_out, C_in)
    bc = (b3 + bs).astype(jnp.float32)                        # (C_out, 1)
    return w1f, b1, w2l, w2c, w2r, b2, w3f, wsf, bc


# ---------------------------- reference (plain JAX, f32) ----------------------------
def _ref_forward(x, w1_full, bn1, w2_full, bn2, w3_full, bn3, ws_full, bns, eps=1e-5):
    def conv(h, w, stride=1, pad=0):
        return lax.conv_general_dilated(
            h, w, (stride,), [(pad, pad)], dimension_numbers=("NCH", "OIH", "NCH"))

    def bn(h, p):
        gamma, beta, mean, var = p
        return (gamma[None, :, None] * (h - mean[None, :, None])
                / jnp.sqrt(var[None, :, None] + eps) + beta[None, :, None])

    h = jax.nn.relu(bn(conv(x, w1_full), bn1))
    h = jax.nn.relu(bn(conv(h, w2_full, pad=1), bn2))
    h = bn(conv(h, w3_full), bn3)
    s = bn(conv(x, ws_full), bns)
    return jax.nn.relu(h + s)


if __name__ == "__main__":
    # Small shapes consistent with the module: N=8, in=8, bottleneck=4, out=16, L=128.
    N, C_in, Cb, C_out, L = 8, 8, 4, 16, 128
    stride = 1  # kernel implements stride=1 (see TODO above)

    key = jax.random.PRNGKey(0)
    keys = jax.random.split(key, 9)

    # Conv weights (PyTorch OIH layout), no bias.
    w1_full = 0.2 * jax.random.normal(keys[0], (Cb, C_in, 1), jnp.float32)
    w2_full = 0.2 * jax.random.normal(keys[1], (Cb, Cb, 3), jnp.float32)
    w3_full = 0.2 * jax.random.normal(keys[2], (C_out, Cb, 1), jnp.float32)
    ws_full = 0.2 * jax.random.normal(keys[3], (C_out, C_in, 1), jnp.float32)

    def bn_params(k, C):
        k1, k2, k3, k4 = jax.random.split(k, 4)
        gamma = 1.0 + 0.1 * jax.random.normal(k1, (C,), jnp.float32)
        beta = 0.1 * jax.random.normal(k2, (C,), jnp.float32)
        mean = 0.1 * jax.random.normal(k3, (C,), jnp.float32)
        var = 1.0 + 0.1 * jax.random.uniform(k4, (C,), jnp.float32)
        return gamma, beta, mean, var

    bn1 = bn_params(keys[4], Cb)
    bn2 = bn_params(keys[5], Cb)
    bn3 = bn_params(keys[6], C_out)
    bns = bn_params(keys[7], C_out)

    x = jax.random.normal(keys[8], (N, C_in, L), jnp.float32)

    params = pack_params(w1_full, bn1, w2_full, bn2, w3_full, bn3, ws_full, bns)

    # batch_tile chosen per device: grid=(1,) on single-TC v5e/v6e, grid=(2,) on v7x.
    out = bottleneck_conv1d_block(x, params)
    out = jax.block_until_ready(out)

    ref = jax.block_until_ready(
        _ref_forward(x, w1_full, bn1, w2_full, bn2, w3_full, bn3, ws_full, bns))

    assert out.shape == (N, C_out, L), out.shape
    # Tolerance sized for bf16 MXU operands (f32 accumulation) through 3 chained matmuls.
    assert jnp.allclose(out, ref, atol=5e-2, rtol=5e-2), float(jnp.max(jnp.abs(out - ref)))
    print("KERNEL_OK")
</pallas_src>

<mosaic_0001>
module attributes {stable_mosaic.version = 11 : i64} {
  func.func @_bottleneck_kernel(%arg0: i32, %arg1: memref<8x1024xbf16, #tpu.memory_space<vmem>>, %arg2: memref<4x8xbf16, #tpu.memory_space<vmem>>, %arg3: memref<4x1xf32, #tpu.memory_space<vmem>>, %arg4: memref<4x4xbf16, #tpu.memory_space<vmem>>, %arg5: memref<4x4xbf16, #tpu.memory_space<vmem>>, %arg6: memref<4x4xbf16, #tpu.memory_space<vmem>>, %arg7: memref<4x1xf32, #tpu.memory_space<vmem>>, %arg8: memref<16x4xbf16, #tpu.memory_space<vmem>>, %arg9: memref<16x8xbf16, #tpu.memory_space<vmem>>, %arg10: memref<16x1xf32, #tpu.memory_space<vmem>>, %arg11: memref<16x1024xf32, #tpu.memory_space<vmem>>) attributes {dimension_semantics = [#tpu.dimension_semantics<parallel>], iteration_bounds = array<i64: 1>, scalar_prefetch = 0 : i64, scratch_operands = 0 : i64, tpu.core_type = #tpu.core_type<tc>, window_params = [{transform_indices = @transform_0, window_bounds = array<i64: 8, 1024>}, {pipeline_mode = #tpu.pipeline_mode<synchronous>, transform_indices = @transform_1, window_bounds = array<i64: 4, 8>}, {pipeline_mode = #tpu.pipeline_mode<synchronous>, transform_indices = @transform_2, window_bounds = array<i64: 4, 1>}, {pipeline_mode = #tpu.pipeline_mode<synchronous>, transform_indices = @transform_3, window_bounds = array<i64: 4, 4>}, {pipeline_mode = #tpu.pipeline_mode<synchronous>, transform_indices = @transform_4, window_bounds = array<i64: 4, 4>}, {pipeline_mode = #tpu.pipeline_mode<synchronous>, transform_indices = @transform_5, window_bounds = array<i64: 4, 4>}, {pipeline_mode = #tpu.pipeline_mode<synchronous>, transform_indices = @transform_6, window_bounds = array<i64: 4, 1>}, {pipeline_mode = #tpu.pipeline_mode<synchronous>, transform_indices = @transform_7, window_bounds = array<i64: 16, 4>}, {pipeline_mode = #tpu.pipeline_mode<synchronous>, transform_indices = @transform_8, window_bounds = array<i64: 16, 8>}, {pipeline_mode = #tpu.pipeline_mode<synchronous>, transform_indices = @transform_9, window_bounds = array<i64: 16, 1>}, {transform_indices = @transform_10, window_bounds = array<i64: 16, 1024>}]} {
    %c0 = arith.constant 0 : index
    %c0_0 = arith.constant 0 : index
    %0 = vector.load %arg1[%c0, %c0_0] : memref<8x1024xbf16, #tpu.memory_space<vmem>>, vector<8x1024xbf16>
    %c0_1 = arith.constant 0 : index
    %c0_2 = arith.constant 0 : index
    %1 = vector.load %arg2[%c0_1, %c0_2] : memref<4x8xbf16, #tpu.memory_space<vmem>>, vector<4x8xbf16>
    %cst = arith.constant dense<0.000000e+00> : vector<4x1024xf32>
    %2 = tpu.matmul %1, %0, %cst {dimension_numbers = #tpu.dot_dimension_numbers<[1], [0], [0], [1], [0, 0, 1, 1], [], []>} : vector<4x8xbf16>, vector<8x1024xbf16>, vector<4x1024xf32> -> vector<4x1024xf32>
    %c0_3 = arith.constant 0 : index
    %c0_4 = arith.constant 0 : index
    %3 = vector.load %arg3[%c0_3, %c0_4] : memref<4x1xf32, #tpu.memory_space<vmem>>, vector<4x1xf32>
    %4 = vector.broadcast %3 : vector<4x1xf32> to vector<4x1024xf32>
    %5 = arith.addf %2, %4 : vector<4x1024xf32>
    %cst_5 = arith.constant 0.000000e+00 : f32
    %6 = vector.broadcast %cst_5 : f32 to vector<4x1024xf32>
    %7 = arith.maximumf %5, %6 : vector<4x1024xf32>
    %8 = tpu.iota {dimensions = array<i32: 1>} : vector<1x1024xi32>
    %c128_i32 = arith.constant 128 : i32
    %9 = vector.broadcast %c128_i32 : i32 to vector<1x1024xi32>
    %10 = arith.remsi %8, %9 : vector<1x1024xi32>
    %c0_i32 = arith.constant 0 : i32
    %11 = vector.broadcast %c0_i32 : i32 to vector<1x1024xi32>
    %12 = arith.cmpi ne, %10, %11 : vector<1x1024xi32>
    %c1_i32 = arith.constant 1 : i32
    %13 = tpu.dynamic_rotate %7 by %c1_i32 dim 1 : vector<4x1024xf32>, i32 -> vector<4x1024xf32>
    %cst_6 = arith.constant 0.000000e+00 : f32
    %14 = vector.shape_cast %12 : vector<1x1024xi1> to vector<1x1024xi1>
    %15 = vector.broadcast %14 : vector<1x1024xi1> to vector<4x1024xi1>
    %16 = vector.broadcast %cst_6 : f32 to vector<4x1024xf32>
    %17 = arith.select %15, %13, %16 : vector<4x1024xi1>, vector<4x1024xf32>
    %c127_i32 = arith.constant 127 : i32
    %18 = vector.broadcast %c127_i32 : i32 to vector<1x1024xi32>
    %19 = arith.cmpi ne, %10, %18 : vector<1x1024xi32>
    %c1023_i32 = arith.constant 1023 : i32
    %20 = tpu.dynamic_rotate %7 by %c1023_i32 dim 1 : vector<4x1024xf32>, i32 -> vector<4x1024xf32>
    %cst_7 = arith.constant 0.000000e+00 : f32
    %21 = vector.shape_cast %19 : vector<1x1024xi1> to vector<1x1024xi1>
    %22 = vector.broadcast %21 : vector<1x1024xi1> to vector<4x1024xi1>
    %23 = vector.broadcast %cst_7 : f32 to vector<4x1024xf32>
    %24 = arith.select %22, %20, %23 : vector<4x1024xi1>, vector<4x1024xf32>
    %c0_8 = arith.constant 0 : index
    %c0_9 = arith.constant 0 : index
    %25 = vector.load %arg4[%c0_8, %c0_9] : memref<4x4xbf16, #tpu.memory_space<vmem>>, vector<4x4xbf16>
    %26 = arith.truncf %17 : vector<4x1024xf32> to vector<4x1024xbf16>
    %cst_10 = arith.constant dense<0.000000e+00> : vector<4x1024xf32>
    %27 = tpu.matmul %25, %26, %cst_10 {dimension_numbers = #tpu.dot_dimension_numbers<[1], [0], [0], [1], [0, 0, 1, 1], [], []>} : vector<4x4xbf16>, vector<4x1024xbf16>, vector<4x1024xf32> -> vector<4x1024xf32>
    %c0_11 = arith.constant 0 : index
    %c0_12 = arith.constant 0 : index
    %28 = vector.load %arg5[%c0_11, %c0_12] : memref<4x4xbf16, #tpu.memory_space<vmem>>, vector<4x4xbf16>
    %29 = arith.truncf %7 : vector<4x1024xf32> to vector<4x1024xbf16>
    %cst_13 = arith.constant dense<0.000000e+00> : vector<4x1024xf32>
    %30 = tpu.matmul %28, %29, %cst_13 {dimension_numbers = #tpu.dot_dimension_numbers<[1], [0], [0], [1], [0, 0, 1, 1], [], []>} : vector<4x4xbf16>, vector<4x1024xbf16>, vector<4x1024xf32> -> vector<4x1024xf32>
    %31 = arith.addf %27, %30 : vector<4x1024xf32>
    %c0_14 = arith.constant 0 : index
    %c0_15 = arith.constant 0 : index
    %32 = vector.load %arg6[%c0_14, %c0_15] : memref<4x4xbf16, #tpu.memory_space<vmem>>, vector<4x4xbf16>
    %33 = arith.truncf %24 : vector<4x1024xf32> to vector<4x1024xbf16>
    %cst_16 = arith.constant dense<0.000000e+00> : vector<4x1024xf32>
    %34 = tpu.matmul %32, %33, %cst_16 {dimension_numbers = #tpu.dot_dimension_numbers<[1], [0], [0], [1], [0, 0, 1, 1], [], []>} : vector<4x4xbf16>, vector<4x1024xbf16>, vector<4x1024xf32> -> vector<4x1024xf32>
    %35 = arith.addf %31, %34 : vector<4x1024xf32>
    %c0_17 = arith.constant 0 : index
    %c0_18 = arith.constant 0 : index
    %36 = vector.load %arg7[%c0_17, %c0_18] : memref<4x1xf32, #tpu.memory_space<vmem>>, vector<4x1xf32>
    %37 = vector.broadcast %36 : vector<4x1xf32> to vector<4x1024xf32>
    %38 = arith.addf %35, %37 : vector<4x1024xf32>
    %cst_19 = arith.constant 0.000000e+00 : f32
    %39 = vector.broadcast %cst_19 : f32 to vector<4x1024xf32>
    %40 = arith.maximumf %38, %39 : vector<4x1024xf32>
    %c0_20 = arith.constant 0 : index
    %c0_21 = arith.constant 0 : index
    %41 = vector.load %arg8[%c0_20, %c0_21] : memref<16x4xbf16, #tpu.memory_space<vmem>>, vector<16x4xbf16>
    %42 = arith.truncf %40 : vector<4x1024xf32> to vector<4x1024xbf16>
    %cst_22 = arith.constant dense<0.000000e+00> : vector<16x1024xf32>
    %43 = tpu.matmul %41, %42, %cst_22 {dimension_numbers = #tpu.dot_dimension_numbers<[1], [0], [0], [1], [0, 0, 1, 1], [], []>} : vector<16x4xbf16>, vector<4x1024xbf16>, vector<16x1024xf32> -> vector<16x1024xf32>
    %c0_23 = arith.constant 0 : index
    %c0_24 = arith.constant 0 : index
    %44 = vector.load %arg9[%c0_23, %c0_24] : memref<16x8xbf16, #tpu.memory_space<vmem>>, vector<16x8xbf16>
    %cst_25 = arith.constant dense<0.000000e+00> : vector<16x1024xf32>
    %45 = tpu.matmul %44, %0, %cst_25 {dimension_numbers = #tpu.dot_dimension_numbers<[1], [0], [0], [1], [0, 0, 1, 1], [], []>} : vector<16x8xbf16>, vector<8x1024xbf16>, vector<16x1024xf32> -> vector<16x1024xf32>
    %46 = arith.addf %43, %45 : vector<16x1024xf32>
    %c0_26 = arith.constant 0 : index
    %c0_27 = arith.constant 0 : index
    %47 = vector.load %arg10[%c0_26, %c0_27] : memref<16x1xf32, #tpu.memory_space<vmem>>, vector<16x1xf32>
    %48 = vector.broadcast %47 : vector<16x1xf32> to vector<16x1024xf32>
    %49 = arith.addf %46, %48 : vector<16x1024xf32>
    %cst_28 = arith.constant 0.000000e+00 : f32
    %50 = vector.broadcast %cst_28 : f32 to vector<16x1024xf32>
    %51 = arith.maximumf %49, %50 : vector<16x1024xf32>
    %c0_29 = arith.constant 0 : index
    %c0_30 = arith.constant 0 : index
    %52 = vector.load %arg11[%c0_29, %c0_30] : memref<16x1024xf32, #tpu.memory_space<vmem>>, vector<16x1024xf32>
    tpu.vector_store %arg11[%c0_29, %c0_30], %51 {strides = array<i32>} : memref<16x1024xf32, #tpu.memory_space<vmem>>, vector<16x1024xf32>,
    return
  }
  func.func @transform_0(%arg0: i32) -> (i32, i32) {
    %c0_i32 = arith.constant 0 : i32
    %c0_i32_0 = arith.constant 0 : i32
    return %c0_i32, %arg0 : i32, i32
  }
  func.func @transform_1(%arg0: i32) -> (i32, i32) {
    %c0_i32 = arith.constant 0 : i32
    %c0_i32_0 = arith.constant 0 : i32
    %c0_i32_1 = arith.constant 0 : i32
    return %c0_i32, %c0_i32_0 : i32, i32
  }
  func.func @transform_2(%arg0: i32) -> (i32, i32) {
    %c0_i32 = arith.constant 0 : i32
    %c0_i32_0 = arith.constant 0 : i32
    %c0_i32_1 = arith.constant 0 : i32
    return %c0_i32, %c0_i32_0 : i32, i32
  }
  func.func @transform_3(%arg0: i32) -> (i32, i32) {
    %c0_i32 = arith.constant 0 : i32
    %c0_i32_0 = arith.constant 0 : i32
    %c0_i32_1 = arith.constant 0 : i32
    return %c0_i32, %c0_i32_0 : i32, i32
  }
  func.func @transform_4(%arg0: i32) -> (i32, i32) {
    %c0_i32 = arith.constant 0 : i32
    %c0_i32_0 = arith.constant 0 : i32
    %c0_i32_1 = arith.constant 0 : i32
    return %c0_i32, %c0_i32_0 : i32, i32
  }
  func.func @transform_5(%arg0: i32) -> (i32, i32) {
    %c0_i32 = arith.constant 0 : i32
    %c0_i32_0 = arith.constant 0 : i32
    %c0_i32_1 = arith.constant 0 : i32
    return %c0_i32, %c0_i32_0 : i32, i32
  }
  func.func @transform_6(%arg0: i32) -> (i32, i32) {
    %c0_i32 = arith.constant 0 : i32
    %c0_i32_0 = arith.constant 0 : i32
    %c0_i32_1 = arith.constant 0 : i32
    return %c0_i32, %c0_i32_0 : i32, i32
  }
  func.func @transform_7(%arg0: i32) -> (i32, i32) {
    %c0_i32 = arith.constant 0 : i32
    %c0_i32_0 = arith.constant 0 : i32
    %c0_i32_1 = arith.constant 0 : i32
    return %c0_i32, %c0_i32_0 : i32, i32
  }
  func.func @transform_8(%arg0: i32) -> (i32, i32) {
    %c0_i32 = arith.constant 0 : i32
    %c0_i32_0 = arith.constant 0 : i32
    %c0_i32_1 = arith.constant 0 : i32
    return %c0_i32, %c0_i32_0 : i32, i32
  }
  func.func @transform_9(%arg0: i32) -> (i32, i32) {
    %c0_i32 = arith.constant 0 : i32
    %c0_i32_0 = arith.constant 0 : i32
    %c0_i32_1 = arith.constant 0 : i32
    return %c0_i32, %c0_i32_0 : i32, i32
  }
  func.func @transform_10(%arg0: i32) -> (i32, i32) {
    %c0_i32 = arith.constant 0 : i32
    %c0_i32_0 = arith.constant 0 : i32
    return %c0_i32, %arg0 : i32, i32
  }
}

</mosaic_0001>

<llo_original>
// kernel: tpu_custom_call.1
$region0: #{tpu_custom_call.1}
  #allocation0 [shape = 'u32[]', space=smem, size = 0x4, offset = 0x4, fixed_abs, tag = 'smem constant byte address 0x4 - core index']
  #allocation1 [shape = 'u32[72,128]{1,0:T(1,128)}', space=vmem, size = 0x9000, scoped, tag = 'internal scratch']
  %s0 = inlined_call_operand.hbm [shape: bf16[8,1024], index: 0, kind: input, shape index: {}]
  %s1 = inlined_call_operand.vmem [shape: bf16[4,8], index: 1, kind: input, shape index: {}]
  %s2 = inlined_call_operand.vmem [shape: f32[4,1], index: 2, kind: input, shape index: {}]
  %s3 = inlined_call_operand.vmem [shape: bf16[4,4], index: 3, kind: input, shape index: {}]
  %s4 = inlined_call_operand.vmem [shape: bf16[4,4], index: 4, kind: input, shape index: {}]
  %s5 = inlined_call_operand.vmem [shape: bf16[4,4], index: 5, kind: input, shape index: {}]
  %s6 = inlined_call_operand.vmem [shape: f32[4,1], index: 6, kind: input, shape index: {}]
  %s7 = inlined_call_operand.vmem [shape: bf16[16,4], index: 7, kind: input, shape index: {}]
  %s8 = inlined_call_operand.vmem [shape: bf16[16,8], index: 8, kind: input, shape index: {}]
  %s9 = inlined_call_operand.vmem [shape: f32[16,1], index: 9, kind: input, shape index: {}]
  %s10 = inlined_call_operand.hbm [shape: f32[16,1024], index: 10, kind: output, shape index: {}]
  %s11 = sld [smem:[#allocation0]]
  $region54: #{tpu_custom_call.1} parent=0
    _
  %s13 = ssub.s32 1, %s11
  %s14 = scalar_select 0, %s13, %s11
  $region1: #{tpu_custom_call.1} parent=0
    #allocation2 [shape = 'u8[16384]{0}', space=vmem, size = 0x4000, scoped, tag = 'input window, operand 0, single buffered']
    #allocation3 [shape = 's32[1]{0}', space=sflag, size = 0x4, scoped, tag = 'scoped memory for tpu_custom_call.1']
    #allocation4 [shape = 's32[1]{0}', space=sflag, size = 0x4, scoped, tag = 'scoped memory for tpu_custom_call.1']
    #allocation5 [shape = 'u8[65536]{0}', space=vmem, size = 0x10000, scoped, tag = 'output window, operand 0, single buffered']
    %15 = vsyncpa [#allocation3], 0
    %16 = vsyncpa [#allocation4], 0
    // Predicated region
    $region2: #{tpu_custom_call.1} parent=1 // pred_check
      _
    $region3: #{tpu_custom_call.1} parent=1 // pred_check_branch
      %18 = sbr.rel (0) target = $region5
    $region4: #{tpu_custom_call.1} parent=1 // pred_region
      %20 = vsyncadd [#allocation3], 0
      %s22 = sshll.u32 %s0, 4
      %s23 = int_to_ptr.hbm [resolvable:$true] %s22
      %s24 = sshll.u32 [#allocation2], 4
      %s25 = int_to_ptr.vmem [resolvable:$true] %s24
      %27 = dma.hbm_to_vmem [thread:$0]  %s23, 512, %s25, [#allocation3]
    $region5: #{tpu_custom_call.1} parent=1 // pred_fallthru
      _
    // Predicated region
    $region6: #{tpu_custom_call.1} parent=1 // pred_check
      _
    $region7: #{tpu_custom_call.1} parent=1 // pred_check_branch
      %29 = sbr.rel (0) target = $region9
    $region8: #{tpu_custom_call.1} parent=1 // pred_region
      _
    $region9: #{tpu_custom_call.1} parent=1 // pred_fallthru
      _
    // Predicated region
    $region10: #{tpu_custom_call.1} parent=1 // pred_check
      _
    $region11: #{tpu_custom_call.1} parent=1 // pred_check_branch
      %31 = sbr.rel (0) target = $region13
    $region12: #{tpu_custom_call.1} parent=1 // pred_region
      _
    $region13: #{tpu_custom_call.1} parent=1 // pred_fallthru
      _
    // Predicated region
    $region14: #{tpu_custom_call.1} parent=1 // pred_check
      _
    $region15: #{tpu_custom_call.1} parent=1 // pred_check_branch
      %33 = sbr.rel (0) target = $region17
    $region16: #{tpu_custom_call.1} parent=1 // pred_region
      _
    $region17: #{tpu_custom_call.1} parent=1 // pred_fallthru
      _
    // Predicated region
    $region18: #{tpu_custom_call.1} parent=1 // pred_check
      _
    $region19: #{tpu_custom_call.1} parent=1 // pred_check_branch
      %35 = sbr.rel (0) target = $region21
    $region20: #{tpu_custom_call.1} parent=1 // pred_region
      _
    $region21: #{tpu_custom_call.1} parent=1 // pred_fallthru
      _
    // Predicated region
    $region22: #{tpu_custom_call.1} parent=1 // pred_check
      _
    $region23: #{tpu_custom_call.1} parent=1 // pred_check_branch
      %37 = sbr.rel (0) target = $region25
    $region24: #{tpu_custom_call.1} parent=1 // pred_region
      _
    $region25: #{tpu_custom_call.1} parent=1 // pred_fallthru
      _
    // Predicated region
    $region26: #{tpu_custom_call.1} parent=1 // pred_check
      _
    $region27: #{tpu_custom_call.1} parent=1 // pred_check_branch
      %39 = sbr.rel (0) target = $region29
    $region28: #{tpu_custom_call.1} parent=1 // pred_region
      _
    $region29: #{tpu_custom_call.1} parent=1 // pred_fallthru
      _
    // Predicated region
    $region30: #{tpu_custom_call.1} parent=1 // pred_check
      _
    $region31: #{tpu_custom_call.1} parent=1 // pred_check_branch
      %41 = sbr.rel (0) target = $region33
    $region32: #{tpu_custom_call.1} parent=1 // pred_region
      _
    $region33: #{tpu_custom_call.1} parent=1 // pred_fallthru
      _
    // Predicated region
    $region34: #{tpu_custom_call.1} parent=1 // pred_check
      _
    $region35: #{tpu_custom_call.1} parent=1 // pred_check_branch
      %43 = sbr.rel (0) target = $region37
    $region36: #{tpu_custom_call.1} parent=1 // pred_region
      _
    $region37: #{tpu_custom_call.1} parent=1 // pred_fallthru
      _
    // Predicated region
    $region38: #{tpu_custom_call.1} parent=1 // pred_check
      _
    $region39: #{tpu_custom_call.1} parent=1 // pred_check_branch
      %45 = sbr.rel (0) target = $region41
    $region40: #{tpu_custom_call.1} parent=1 // pred_region
      _
    $region41: #{tpu_custom_call.1} parent=1 // pred_fallthru
      _
    // Predicated region
    $region42: #{tpu_custom_call.1} parent=1 // pred_check
      _
    $region43: #{tpu_custom_call.1} parent=1 // pred_check_branch
      %47 = sbr.rel (0) target = $region45
    $region44: #{tpu_custom_call.1} parent=1 // pred_region
      %49 = dma.done [#allocation3], 512
    $region45: #{tpu_custom_call.1} parent=1 // pred_fallthru
      _
    %v51 = vld [vmem:[#allocation2] sm:$0xff]
    %v52 = vld [vmem:[#allocation2 + $0x8] sm:$0xff]
    %v53 = vld [vmem:[#allocation2 + $0x10] sm:$0xff]
    %v54 = vld [vmem:[#allocation2 + $0x18] sm:$0xff]
    %v55 = vld [vmem:[%s1] sm:$0x3]
    %v56 = vld [vmem:[%s2] sm:$0xf]
    %58 = vset.pattern.permute.xlu0 0
    %59 = vperm.xlu0 %58, %v56
    %v60 = vpop.permute.xlu0 %59
    %v66 = vunpack.c.l.b16 %v51
    %v67 = vunpack.c.h.b16 %v51
    %v68 = vunpack.c.l.b16 %v52
    %v69 = vunpack.c.h.b16 %v52
    %v70 = vunpack.c.l.b16 %v53
    %v71 = vunpack.c.h.b16 %v53
    %v72 = vunpack.c.l.b16 %v54
    %v73 = vunpack.c.h.b16 %v54
    %v74 = vpack.c.b16 %v66, %v66
    %v75 = vpack.c.b16 %v67, %v67
    %v76 = vpack.c.b16 %v68, %v68
    %v77 = vpack.c.b16 %v69, %v69
    %v78 = vpack.c.b16 %v70, %v70
    %v79 = vpack.c.b16 %v71, %v71
    %v80 = vpack.c.b16 %v72, %v72
    %v81 = vpack.c.b16 %v73, %v73
    %vm82 = vcmask 64512
    %v84 = vsel %vm82, %v55, 0
    %vm86 = vcmask 1043456
    %v88 = vsel %vm86, %v74, 0
    %v91 = vsel %vm86, %v75, 0
    %v94 = vsel %vm86, %v76, 0
    %v97 = vsel %vm86, %v77, 0
    %v100 = vsel %vm86, %v78, 0
    %v103 = vsel %vm86, %v79, 0
    %v106 = vsel %vm86, %v80, 0
    %v109 = vsel %vm86, %v81, 0
    %111 = vmatpush.bf16.msra.mxu0 0
    %112 = vmatpush.bf16.msra.mxu0 0
    %113 = vmatpush.bf16.msra.mxu0 0
    %114 = vmatpush.bf16.msra.mxu0 0
    %115 = vmatpush.bf16.msra.mxu0 0
    %116 = vmatpush.bf16.msra.mxu0 0
    %117 = vmatpush.bf16.msra.mxu0 0
    %118 = vmatpush.bf16.msra.mxu0 %v88
    %119 = vmatmul.bf16.gmra.mxu0 %v84
    %v120 = vpop.f32.mrf.mxu0
    %v121 = vadd.f32 %v60, %v120
    %v122 = vpop.f32.mrf.mxu0
    %123 = vdwg.mxu0
    %124 = vmatpush.bf16.msra.mxu0 0
    %125 = vmatpush.bf16.msra.mxu0 0
    %126 = vmatpush.bf16.msra.mxu0 0
    %127 = vmatpush.bf16.msra.mxu0 0
    %128 = vmatpush.bf16.msra.mxu0 0
    %129 = vmatpush.bf16.msra.mxu0 0
    %130 = vmatpush.bf16.msra.mxu0 0
    %131 = vmatpush.bf16.msra.mxu0 %v91
    %132 = vmatmul.bf16.gmra.mxu0 %v84
    %v133 = vpop.f32.mrf.mxu0
    %v134 = vadd.f32 %v60, %v133
    %v135 = vpop.f32.mrf.mxu0
    %136 = vdwg.mxu0
    %137 = vmatpush.bf16.msra.mxu0 0
    %138 = vmatpush.bf16.msra.mxu0 0
    %139 = vmatpush.bf16.msra.mxu0 0
    %140 = vmatpush.bf16.msra.mxu0 0
    %141 = vmatpush.bf16.msra.mxu0 0
    %142 = vmatpush.bf16.msra.mxu0 0
    %143 = vmatpush.bf16.msra.mxu0 0
    %144 = vmatpush.bf16.msra.mxu0 %v94
    %145 = vmatmul.bf16.gmra.mxu0 %v84
    %v146 = vpop.f32.mrf.mxu0
    %v147 = vadd.f32 %v60, %v146
    %v148 = vpop.f32.mrf.mxu0
    %149 = vdwg.mxu0
    %150 = vmatpush.bf16.msra.mxu0 0
    %151 = vmatpush.bf16.msra.mxu0 0
    %152 = vmatpush.bf16.msra.mxu0 0
    %153 = vmatpush.bf16.msra.mxu0 0
    %154 = vmatpush.bf16.msra.mxu0 0
    %155 = vmatpush.bf16.msra.mxu0 0
    %156 = vmatpush.bf16.msra.mxu0 0
    %157 = vmatpush.bf16.msra.mxu0 %v97
    %158 = vmatmul.bf16.gmra.mxu0 %v84
    %v159 = vpop.f32.mrf.mxu0
    %v160 = vadd.f32 %v60, %v159
    %v161 = vpop.f32.mrf.mxu0
    %162 = vdwg.mxu0
    %163 = vmatpush.bf16.msra.mxu0 0
    %164 = vmatpush.bf16.msra.mxu0 0
    %165 = vmatpush.bf16.msra.mxu0 0
    %166 = vmatpush.bf16.msra.mxu0 0
    %167 = vmatpush.bf16.msra.mxu0 0
    %168 = vmatpush.bf16.msra.mxu0 0
    %169 = vmatpush.bf16.msra.mxu0 0
    %170 = vmatpush.bf16.msra.mxu0 %v100
    %171 = vmatmul.bf16.gmra.mxu0 %v84
    %v172 = vpop.f32.mrf.mxu0
    %v173 = vadd.f32 %v60, %v172
    %v174 = vpop.f32.mrf.mxu0
    %175 = vdwg.mxu0
    %176 = vmatpush.bf16.msra.mxu0 0
    %177 = vmatpush.bf16.msra.mxu0 0
    %178 = vmatpush.bf16.msra.mxu0 0
    %179 = vmatpush.bf16.msra.mxu0 0
    %180 = vmatpush.bf16.msra.mxu0 0
    %181 = vmatpush.bf16.msra.mxu0 0
    %182 = vmatpush.bf16.msra.mxu0 0
    %183 = vmatpush.bf16.msra.mxu0 %v103
    %184 = vmatmul.bf16.gmra.mxu0 %v84
    %v185 = vpop.f32.mrf.mxu0
    %v186 = vadd.f32 %v60, %v185
    %v187 = vpop.f32.mrf.mxu0
    %188 = vdwg.mxu0
    %189 = vmatpush.bf16.msra.mxu0 0
    %190 = vmatpush.bf16.msra.mxu0 0
    %191 = vmatpush.bf16.msra.mxu0 0
    %192 = vmatpush.bf16.msra.mxu0 0
    %193 = vmatpush.bf16.msra.mxu0 0
    %194 = vmatpush.bf16.msra.mxu0 0
    %195 = vmatpush.bf16.msra.mxu0 0
    %196 = vmatpush.bf16.msra.mxu0 %v106
    %197 = vmatmul.bf16.gmra.mxu0 %v84
    %v198 = vpop.f32.mrf.mxu0
    %v199 = vadd.f32 %v60, %v198
    %v200 = vpop.f32.mrf.mxu0
    %201 = vdwg.mxu0
    %202 = vmatpush.bf16.msra.mxu0 0
    %203 = vmatpush.bf16.msra.mxu0 0
    %204 = vmatpush.bf16.msra.mxu0 0
    %205 = vmatpush.bf16.msra.mxu0 0
    %206 = vmatpush.bf16.msra.mxu0 0
    %207 = vmatpush.bf16.msra.mxu0 0
    %208 = vmatpush.bf16.msra.mxu0 0
    %209 = vmatpush.bf16.msra.mxu0 %v109
    %210 = vmatmul.bf16.gmra.mxu0 %v84
    %v211 = vpop.f32.mrf.mxu0
    %v212 = vadd.f32 %v60, %v211
    %v213 = vpop.f32.mrf.mxu0
    %214 = vdwg.mxu0
    %v215 = vmax.f32 %v121, 0.0
    %v216 = vmax.f32 %v134, 0.0
    %v217 = vmax.f32 %v147, 0.0
    %v218 = vmax.f32 %v160, 0.0
    %v219 = vmax.f32 %v173, 0.0
    %v220 = vmax.f32 %v186, 0.0
    %v221 = vmax.f32 %v199, 0.0
    %v222 = vmax.f32 %v212, 0.0
    %v223 = vlaneseq
    %v224 = vand.u32 %v223, 127
    %v225 = vadd.s32 %v224, 128
    %v226 = vadd.s32 %v224, 256
    %v227 = vadd.s32 %v224, 384
    %v228 = vadd.s32 %v224, 512
    %v229 = vadd.s32 %v224, 640
    %v230 = vadd.s32 %v224, 768
    %v231 = vadd.s32 %v224, 896
    %vm232 = vcmp.lt.s32.totalorder %v224, 0
    %v233 = vsub.s32 0, %v224
    %v234 = vsel %vm232, %v233, %v224
    %v235 = vshrl.u32 %v234, 7
    %v236 = vand.u32 %v234, 127
    %v237 = vsub.s32 0, %v236
    %v238 = vsel %vm232, %v237, %v236
    %vm239 = vcmp.lt.s32.totalorder %v225, 0
    %v240 = vsub.s32 0, %v225
    %v241 = vsel %vm239, %v240, %v225
    %v242 = vshrl.u32 %v241, 7
    %v243 = vand.u32 %v241, 127
    %v244 = vsub.s32 0, %v243
    %v245 = vsel %vm239, %v244, %v243
    %vm246 = vcmp.lt.s32.totalorder %v226, 0
    %v247 = vsub.s32 0, %v226
    %v248 = vsel %vm246, %v247, %v226
    %v249 = vshrl.u32 %v248, 7
    %v250 = vand.u32 %v248, 127
    %v251 = vsub.s32 0, %v250
    %v252 = vsel %vm246, %v251, %v250
    %vm253 = vcmp.lt.s32.totalorder %v227, 0
    %v254 = vsub.s32 0, %v227
    %v255 = vsel %vm253, %v254, %v227
    %v256 = vshrl.u32 %v255, 7
    %v257 = vand.u32 %v255, 127
    %v258 = vsub.s32 0, %v257
    %v259 = vsel %vm253, %v258, %v257
    %vm260 = vcmp.lt.s32.totalorder %v228, 0
    %v261 = vsub.s32 0, %v228
    %v262 = vsel %vm260, %v261, %v228
    %v263 = vshrl.u32 %v262, 7
    %v264 = vand.u32 %v262, 127
    %v265 = vsub.s32 0, %v264
    %v266 = vsel %vm260, %v265, %v264
    %vm267 = vcmp.lt.s32.totalorder %v229, 0
    %v268 = vsub.s32 0, %v229
    %v269 = vsel %vm267, %v268, %v229
    %v270 = vshrl.u32 %v269, 7
    %v271 = vand.u32 %v269, 127
    %v272 = vsub.s32 0, %v271
    %v273 = vsel %vm267, %v272, %v271
    %vm274 = vcmp.lt.s32.totalorder %v230, 0
    %v275 = vsub.s32 0, %v230
    %v276 = vsel %vm274, %v275, %v230
    %v277 = vshrl.u32 %v276, 7
    %v278 = vand.u32 %v276, 127
    %v279 = vsub.s32 0, %v278
    %v280 = vsel %vm274, %v279, %v278
    %vm281 = vcmp.lt.s32.totalorder %v231, 0
    %v282 = vsub.s32 0, %v231
    %v283 = vsel %vm281, %v282, %v231
    %v284 = vshrl.u32 %v283, 7
    %v285 = vand.u32 %v283, 127
    %v286 = vsub.s32 0, %v285
    %v287 = vsel %vm281, %v286, %v285
    %vm288 = vcmp.ne.s32.totalorder %v238, 0
    %vm289 = vcmp.ne.s32.totalorder %v245, 0
    %vm290 = vcmp.ne.s32.totalorder %v252, 0
    %vm291 = vcmp.ne.s32.totalorder %v259, 0
    %vm292 = vcmp.ne.s32.totalorder %v266, 0
    %vm293 = vcmp.ne.s32.totalorder %v273, 0
    %vm294 = vcmp.ne.s32.totalorder %v280, 0
    %vm295 = vcmp.ne.s32.totalorder %v287, 0
    %296 = vrot.lane.b32.xlu0 %v215, 1
    %v297 = vpop.permute.xlu0 %296
    %298 = vrot.lane.b32.xlu0 %v216, 1
    %v299 = vpop.permute.xlu0 %298
    %300 = vrot.lane.b32.xlu0 %v217, 1
    %v301 = vpop.permute.xlu0 %300
    %302 = vrot.lane.b32.xlu0 %v218, 1
    %v303 = vpop.permute.xlu0 %302
    %304 = vrot.lane.b32.xlu0 %v219, 1
    %v305 = vpop.permute.xlu0 %304
    %306 = vrot.lane.b32.xlu0 %v220, 1
    %v307 = vpop.permute.xlu0 %306
    %308 = vrot.lane.b32.xlu0 %v221, 1
    %v309 = vpop.permute.xlu0 %308
    %310 = vrot.lane.b32.xlu0 %v222, 1
    %v311 = vpop.permute.xlu0 %310
    %vm312 = vcmp.lt.s32.totalorder %v224, 1
    %v313 = vsel %vm312, %v309, %v311
    %v314 = vsel %vm312, %v307, %v309
    %v315 = vsel %vm312, %v305, %v307
    %v316 = vsel %vm312, %v303, %v305
    %v317 = vsel %vm312, %v301, %v303
    %v318 = vsel %vm312, %v299, %v301
    %v319 = vsel %vm312, %v297, %v299
    %v320 = vsel %vm312, %v311, %v297
    %v321 = vsel %vm288, 1, 0
    %v322 = vsel %vm289, 1, 0
    %v323 = vsel %vm290, 1, 0
    %v324 = vsel %vm291, 1, 0
    %v325 = vsel %vm292, 1, 0
    %v326 = vsel %vm293, 1, 0
    %v327 = vsel %vm294, 1, 0
    %v328 = vsel %vm295, 1, 0
    %vm329 = vcmp.eq.s32.totalorder %v321, 1
    %vm330 = vcmp.eq.s32.totalorder %v322, 1
    %vm331 = vcmp.eq.s32.totalorder %v323, 1
    %vm332 = vcmp.eq.s32.totalorder %v324, 1
    %vm333 = vcmp.eq.s32.totalorder %v325, 1
    %vm334 = vcmp.eq.s32.totalorder %v326, 1
    %vm335 = vcmp.eq.s32.totalorder %v327, 1
    %vm336 = vcmp.eq.s32.totalorder %v328, 1
    %v337 = vsel %vm329, %v320, 0.0
    %v338 = vsel %vm330, %v319, 0.0
    %v339 = vsel %vm331, %v318, 0.0
    %v340 = vsel %vm332, %v317, 0.0
    %v341 = vsel %vm333, %v316, 0.0
    %v342 = vsel %vm334, %v315, 0.0
    %v343 = vsel %vm335, %v314, 0.0
    %v344 = vsel %vm336, %v313, 0.0
    %vm345 = vcmp.ne.s32.totalorder %v238, 127
    %vm346 = vcmp.ne.s32.totalorder %v245, 127
    %vm347 = vcmp.ne.s32.totalorder %v252, 127
    %vm348 = vcmp.ne.s32.totalorder %v259, 127
    %vm349 = vcmp.ne.s32.totalorder %v266, 127
    %vm350 = vcmp.ne.s32.totalorder %v273, 127
    %vm351 = vcmp.ne.s32.totalorder %v280, 127
    %vm352 = vcmp.ne.s32.totalorder %v287, 127
    %353 = vrot.lane.b32.xlu0 %v215, 127
    %v354 = vpop.permute.xlu0 %353
    %355 = vrot.lane.b32.xlu0 %v216, 127
    %v356 = vpop.permute.xlu0 %355
    %357 = vrot.lane.b32.xlu0 %v217, 127
    %v358 = vpop.permute.xlu0 %357
    %359 = vrot.lane.b32.xlu0 %v218, 127
    %v360 = vpop.permute.xlu0 %359
    %361 = vrot.lane.b32.xlu0 %v219, 127
    %v362 = vpop.permute.xlu0 %361
    %363 = vrot.lane.b32.xlu0 %v220, 127
    %v364 = vpop.permute.xlu0 %363
    %365 = vrot.lane.b32.xlu0 %v221, 127
    %v366 = vpop.permute.xlu0 %365
    %367 = vrot.lane.b32.xlu0 %v222, 127
    %v368 = vpop.permute.xlu0 %367
    %vm369 = vcmp.lt.s32.totalorder %v224, 127
    %v370 = vsel %vm369, %v366, %v368
    %v371 = vsel %vm369, %v364, %v366
    %v372 = vsel %vm369, %v362, %v364
    %v373 = vsel %vm369, %v360, %v362
    %v374 = vsel %vm369, %v358, %v360
    %v375 = vsel %vm369, %v356, %v358
    %v376 = vsel %vm369, %v354, %v356
    %v377 = vsel %vm369, %v368, %v354
    %v378 = vsel %vm345, 1, 0
    %v379 = vsel %vm346, 1, 0
    %v380 = vsel %vm347, 1, 0
    %v381 = vsel %vm348, 1, 0
    %v382 = vsel %vm349, 1, 0
    %v383 = vsel %vm350, 1, 0
    %v384 = vsel %vm351, 1, 0
    %v385 = vsel %vm352, 1, 0
    %vm386 = vcmp.eq.s32.totalorder %v378, 1
    %vm387 = vcmp.eq.s32.totalorder %v379, 1
    %vm388 = vcmp.eq.s32.totalorder %v380, 1
    %vm389 = vcmp.eq.s32.totalorder %v381, 1
    %vm390 = vcmp.eq.s32.totalorder %v382, 1
    %vm391 = vcmp.eq.s32.totalorder %v383, 1
    %vm392 = vcmp.eq.s32.totalorder %v384, 1
    %vm393 = vcmp.eq.s32.totalorder %v385, 1
    %v394 = vsel %vm386, %v376, 0.0
    %v395 = vsel %vm387, %v375, 0.0
    %v396 = vsel %vm388, %v374, 0.0
    %v397 = vsel %vm389, %v373, 0.0
    %v398 = vsel %vm390, %v372, 0.0
    %v399 = vsel %vm391, %v371, 0.0
    %v400 = vsel %vm392, %v370, 0.0
    %v401 = vsel %vm393, %v377, 0.0
    %v402 = vld [vmem:[%s3] sm:$0x3]
    %v403 = vpack.c.bf16 %v337, %v337
    %v404 = vpack.c.bf16 %v338, %v338
    %v405 = vpack.c.bf16 %v339, %v339
    %v406 = vpack.c.bf16 %v340, %v340
    %v407 = vpack.c.bf16 %v341, %v341
    %v408 = vpack.c.bf16 %v342, %v342
    %v409 = vpack.c.bf16 %v343, %v343
    %v410 = vpack.c.bf16 %v344, %v344
    %v411 = vld [vmem:[%s4] sm:$0x3]
    %v412 = vpack.c.bf16 %v215, %v215
    %v413 = vpack.c.bf16 %v216, %v216
    %v414 = vpack.c.bf16 %v217, %v217
    %v415 = vpack.c.bf16 %v218, %v218
    %v416 = vpack.c.bf16 %v219, %v219
    %v417 = vpack.c.bf16 %v220, %v220
    %v418 = vpack.c.bf16 %v221, %v221
    %v419 = vpack.c.bf16 %v222, %v222
    %vm420 = vcmask 31744
    %v422 = vsel %vm420, %v411, 0
    %vm424 = vcmask 1041408
    %v426 = vsel %vm424, %v412, 0
    %v429 = vsel %vm424, %v413, 0
    %v432 = vsel %vm424, %v414, 0
    %v435 = vsel %vm424, %v415, 0
    %v438 = vsel %vm424, %v416, 0
    %v441 = vsel %vm424, %v417, 0
    %v444 = vsel %vm424, %v418, 0
    %v447 = vsel %vm424, %v419, 0
    %449 = vmatpush.bf16.msra.mxu0 0
    %450 = vmatpush.bf16.msra.mxu0 0
    %451 = vmatpush.bf16.msra.mxu0 0
    %452 = vmatpush.bf16.msra.mxu0 0
    %453 = vmatpush.bf16.msra.mxu0 0
    %454 = vmatpush.bf16.msra.mxu0 0
    %455 = vmatpush.bf16.msra.mxu0 0
    %456 = vmatpush.bf16.msra.mxu0 %v426
    %457 = vmatmul.bf16.gmra.mxu0 %v422
    %v458 = vpop.f32.mrf.mxu0
    %v459 = vadd.f32 0.0, %v458
    %v460 = vpop.f32.mrf.mxu0
    %461 = vdwg.mxu0
    %462 = vmatpush.bf16.msra.mxu0 0
    %463 = vmatpush.bf16.msra.mxu0 0
    %464 = vmatpush.bf16.msra.mxu0 0
    %465 = vmatpush.bf16.msra.mxu0 0
    %466 = vmatpush.bf16.msra.mxu0 0
    %467 = vmatpush.bf16.msra.mxu0 0
    %468 = vmatpush.bf16.msra.mxu0 0
    %469 = vmatpush.bf16.msra.mxu0 %v429
    %470 = vmatmul.bf16.gmra.mxu0 %v422
    %v471 = vpop.f32.mrf.mxu0
    %v472 = vadd.f32 0.0, %v471
    %v473 = vpop.f32.mrf.mxu0
    %474 = vdwg.mxu0
    %475 = vmatpush.bf16.msra.mxu0 0
    %476 = vmatpush.bf16.msra.mxu0 0
    %477 = vmatpush.bf16.msra.mxu0 0
    %478 = vmatpush.bf16.msra.mxu0 0
    %479 = vmatpush.bf16.msra.mxu0 0
    %480 = vmatpush.bf16.msra.mxu0 0
    %481 = vmatpush.bf16.msra.mxu0 0
    %482 = vmatpush.bf16.msra.mxu0 %v432
    %483 = vmatmul.bf16.gmra.mxu0 %v422
    %v484 = vpop.f32.mrf.mxu0
    %v485 = vadd.f32 0.0, %v484
    %v486 = vpop.f32.mrf.mxu0
    %487 = vdwg.mxu0
    %488 = vmatpush.bf16.msra.mxu0 0
    %489 = vmatpush.bf16.msra.mxu0 0
    %490 = vmatpush.bf16.msra.mxu0 0
    %491 = vmatpush.bf16.msra.mxu0 0
    %492 = vmatpush.bf16.msra.mxu0 0
    %493 = vmatpush.bf16.msra.mxu0 0
    %494 = vmatpush.bf16.msra.mxu0 0
    %495 = vmatpush.bf16.msra.mxu0 %v435
    %496 = vmatmul.bf16.gmra.mxu0 %v422
    %v497 = vpop.f32.mrf.mxu0
    %v498 = vadd.f32 0.0, %v497
    %v499 = vpop.f32.mrf.mxu0
    %500 = vdwg.mxu0
    %501 = vmatpush.bf16.msra.mxu0 0
    %502 = vmatpush.bf16.msra.mxu0 0
    %503 = vmatpush.bf16.msra.mxu0 0
    %504 = vmatpush.bf16.msra.mxu0 0
    %505 = vmatpush.bf16.msra.mxu0 0
    %506 = vmatpush.bf16.msra.mxu0 0
    %507 = vmatpush.bf16.msra.mxu0 0
    %508 = vmatpush.bf16.msra.mxu0 %v438
    %509 = vmatmul.bf16.gmra.mxu0 %v422
    %v510 = vpop.f32.mrf.mxu0
    %v511 = vadd.f32 0.0, %v510
    %v512 = vpop.f32.mrf.mxu0
    %513 = vdwg.mxu0
    %514 = vmatpush.bf16.msra.mxu0 0
    %515 = vmatpush.bf16.msra.mxu0 0
    %516 = vmatpush.bf16.msra.mxu0 0
    %517 = vmatpush.bf16.msra.mxu0 0
    %518 = vmatpush.bf16.msra.mxu0 0
    %519 = vmatpush.bf16.msra.mxu0 0
    %520 = vmatpush.bf16.msra.mxu0 0
    %521 = vmatpush.bf16.msra.mxu0 %v441
    %522 = vmatmul.bf16.gmra.mxu0 %v422
    %v523 = vpop.f32.mrf.mxu0
    %v524 = vadd.f32 0.0, %v523
    %v525 = vpop.f32.mrf.mxu0
    %526 = vdwg.mxu0
    %527 = vmatpush.bf16.msra.mxu0 0
    %528 = vmatpush.bf16.msra.mxu0 0
    %529 = vmatpush.bf16.msra.mxu0 0
    %530 = vmatpush.bf16.msra.mxu0 0
    %531 = vmatpush.bf16.msra.mxu0 0
    %532 = vmatpush.bf16.msra.mxu0 0
    %533 = vmatpush.bf16.msra.mxu0 0
    %534 = vmatpush.bf16.msra.mxu0 %v444
    %535 = vmatmul.bf16.gmra.mxu0 %v422
    %v536 = vpop.f32.mrf.mxu0
    %v537 = vadd.f32 0.0, %v536
    %v538 = vpop.f32.mrf.mxu0
    %539 = vdwg.mxu0
    %540 = vmatpush.bf16.msra.mxu0 0
    %541 = vmatpush.bf16.msra.mxu0 0
    %542 = vmatpush.bf16.msra.mxu0 0
    %543 = vmatpush.bf16.msra.mxu0 0
    %544 = vmatpush.bf16.msra.mxu0 0
    %545 = vmatpush.bf16.msra.mxu0 0
    %546 = vmatpush.bf16.msra.mxu0 0
    %547 = vmatpush.bf16.msra.mxu0 %v447
    %548 = vmatmul.bf16.gmra.mxu0 %v422
    %v549 = vpop.f32.mrf.mxu0
    %v550 = vadd.f32 0.0, %v549
    %v551 = vpop.f32.mrf.mxu0
    %552 = vdwg.mxu0
    %v554 = vsel %vm420, %v402, 0
    %v557 = vsel %vm424, %v403, 0
    %v560 = vsel %vm424, %v404, 0
    %v563 = vsel %vm424, %v405, 0
    %v566 = vsel %vm424, %v406, 0
    %v569 = vsel %vm424, %v407, 0
    %v572 = vsel %vm424, %v408, 0
    %v575 = vsel %vm424, %v409, 0
    %v578 = vsel %vm424, %v410, 0
    %580 = vmatpush.bf16.msra.mxu0 0
    %581 = vmatpush.bf16.msra.mxu0 0
    %582 = vmatpush.bf16.msra.mxu0 0
    %583 = vmatpush.bf16.msra.mxu0 0
    %584 = vmatpush.bf16.msra.mxu0 0
    %585 = vmatpush.bf16.msra.mxu0 0
    %586 = vmatpush.bf16.msra.mxu0 0
    %587 = vmatpush.bf16.msra.mxu0 %v557
    %588 = vmatmul.bf16.gmra.mxu0 %v554
    %v589 = vpop.f32.mrf.mxu0
    %v590 = vadd.f32 %v459, %v589
    %v591 = vpop.f32.mrf.mxu0
    %592 = vdwg.mxu0
    %593 = vmatpush.bf16.msra.mxu0 0
    %594 = vmatpush.bf16.msra.mxu0 0
    %595 = vmatpush.bf16.msra.mxu0 0
    %596 = vmatpush.bf16.msra.mxu0 0
    %597 = vmatpush.bf16.msra.mxu0 0
    %598 = vmatpush.bf16.msra.mxu0 0
    %599 = vmatpush.bf16.msra.mxu0 0
    %600 = vmatpush.bf16.msra.mxu0 %v560
    %601 = vmatmul.bf16.gmra.mxu0 %v554
    %v602 = vpop.f32.mrf.mxu0
    %v603 = vadd.f32 %v472, %v602
    %v604 = vpop.f32.mrf.mxu0
    %605 = vdwg.mxu0
    %606 = vmatpush.bf16.msra.mxu0 0
    %607 = vmatpush.bf16.msra.mxu0 0
    %608 = vmatpush.bf16.msra.mxu0 0
    %609 = vmatpush.bf16.msra.mxu0 0
    %610 = vmatpush.bf16.msra.mxu0 0
    %611 = vmatpush.bf16.msra.mxu0 0
    %612 = vmatpush.bf16.msra.mxu0 0
    %613 = vmatpush.bf16.msra.mxu0 %v563
    %614 = vmatmul.bf16.gmra.mxu0 %v554
    %v615 = vpop.f32.mrf.mxu0
    %v616 = vadd.f32 %v485, %v615
    %v617 = vpop.f32.mrf.mxu0
    %618 = vdwg.mxu0
    %619 = vmatpush.bf16.msra.mxu0 0
    %620 = vmatpush.bf16.msra.mxu0 0
    %621 = vmatpush.bf16.msra.mxu0 0
    %622 = vmatpush.bf16.msra.mxu0 0
    %623 = vmatpush.bf16.msra.mxu0 0
    %624 = vmatpush.bf16.msra.mxu0 0
    %625 = vmatpush.bf16.msra.mxu0 0
    %626 = vmatpush.bf16.msra.mxu0 %v566
    %627 = vmatmul.bf16.gmra.mxu0 %v554
    %v628 = vpop.f32.mrf.mxu0
    %v629 = vadd.f32 %v498, %v628
    %v630 = vpop.f32.mrf.mxu0
    %631 = vdwg.mxu0
    %632 = vmatpush.bf16.msra.mxu0 0
    %633 = vmatpush.bf16.msra.mxu0 0
    %634 = vmatpush.bf16.msra.mxu0 0
    %635 = vmatpush.bf16.msra.mxu0 0
    %636 = vmatpush.bf16.msra.mxu0 0
    %637 = vmatpush.bf16.msra.mxu0 0
    %638 = vmatpush.bf16.msra.mxu0 0
    %639 = vmatpush.bf16.msra.mxu0 %v569
    %640 = vmatmul.bf16.gmra.mxu0 %v554
    %v641 = vpop.f32.mrf.mxu0
    %v642 = vadd.f32 %v511, %v641
    %v643 = vpop.f32.mrf.mxu0
    %644 = vdwg.mxu0
    %645 = vmatpush.bf16.msra.mxu0 0
    %646 = vmatpush.bf16.msra.mxu0 0
    %647 = vmatpush.bf16.msra.mxu0 0
    %648 = vmatpush.bf16.msra.mxu0 0
    %649 = vmatpush.bf16.msra.mxu0 0
    %650 = vmatpush.bf16.msra.mxu0 0
    %651 = vmatpush.bf16.msra.mxu0 0
    %652 = vmatpush.bf16.msra.mxu0 %v572
    %653 = vmatmul.bf16.gmra.mxu0 %v554
    %v654 = vpop.f32.mrf.mxu0
    %v655 = vadd.f32 %v524, %v654
    %v656 = vpop.f32.mrf.mxu0
    %657 = vdwg.mxu0
    %658 = vmatpush.bf16.msra.mxu0 0
    %659 = vmatpush.bf16.msra.mxu0 0
    %660 = vmatpush.bf16.msra.mxu0 0
    %661 = vmatpush.bf16.msra.mxu0 0
    %662 = vmatpush.bf16.msra.mxu0 0
    %663 = vmatpush.bf16.msra.mxu0 0
    %664 = vmatpush.bf16.msra.mxu0 0
    %665 = vmatpush.bf16.msra.mxu0 %v575
    %666 = vmatmul.bf16.gmra.mxu0 %v554
    %v667 = vpop.f32.mrf.mxu0
    %v668 = vadd.f32 %v537, %v667
    %v669 = vpop.f32.mrf.mxu0
    %670 = vdwg.mxu0
    %671 = vmatpush.bf16.msra.mxu0 0
    %672 = vmatpush.bf16.msra.mxu0 0
    %673 = vmatpush.bf16.msra.mxu0 0
    %674 = vmatpush.bf16.msra.mxu0 0
    %675 = vmatpush.bf16.msra.mxu0 0
    %676 = vmatpush.bf16.msra.mxu0 0
    %677 = vmatpush.bf16.msra.mxu0 0
    %678 = vmatpush.bf16.msra.mxu0 %v578
    %679 = vmatmul.bf16.gmra.mxu0 %v554
    %v680 = vpop.f32.mrf.mxu0
    %v681 = vadd.f32 %v550, %v680
    %v682 = vpop.f32.mrf.mxu0
    %683 = vdwg.mxu0
    %v684 = vld [vmem:[%s5] sm:$0x3]
    %v685 = vpack.c.bf16 %v394, %v394
    %v686 = vpack.c.bf16 %v395, %v395
    %v687 = vpack.c.bf16 %v396, %v396
    %v688 = vpack.c.bf16 %v397, %v397
    %v689 = vpack.c.bf16 %v398, %v398
    %v690 = vpack.c.bf16 %v399, %v399
    %v691 = vpack.c.bf16 %v400, %v400
    %v692 = vpack.c.bf16 %v401, %v401
    %v694 = vsel %vm420, %v684, 0
    %v697 = vsel %vm424, %v685, 0
    %v700 = vsel %vm424, %v686, 0
    %v703 = vsel %vm424, %v687, 0
    %v706 = vsel %vm424, %v688, 0
    %v709 = vsel %vm424, %v689, 0
    %v712 = vsel %vm424, %v690, 0
    %v715 = vsel %vm424, %v691, 0
    %v718 = vsel %vm424, %v692, 0
    %720 = vmatpush.bf16.msra.mxu0 0
    %721 = vmatpush.bf16.msra.mxu0 0
    %722 = vmatpush.bf16.msra.mxu0 0
    %723 = vmatpush.bf16.msra.mxu0 0
    %724 = vmatpush.bf16.msra.mxu0 0
    %725 = vmatpush.bf16.msra.mxu0 0
    %726 = vmatpush.bf16.msra.mxu0 0
    %727 = vmatpush.bf16.msra.mxu0 %v697
    %728 = vmatmul.bf16.gmra.mxu0 %v694
    %v729 = vpop.f32.mrf.mxu0
    %v730 = vadd.f32 0.0, %v729
    %v731 = vpop.f32.mrf.mxu0
    %732 = vdwg.mxu0
    %733 = vmatpush.bf16.msra.mxu0 0
    %734 = vmatpush.bf16.msra.mxu0 0
    %735 = vmatpush.bf16.msra.mxu0 0
    %736 = vmatpush.bf16.msra.mxu0 0
    %737 = vmatpush.bf16.msra.mxu0 0
    %738 = vmatpush.bf16.msra.mxu0 0
    %739 = vmatpush.bf16.msra.mxu0 0
    %740 = vmatpush.bf16.msra.mxu0 %v700
    %741 = vmatmul.bf16.gmra.mxu0 %v694
    %v742 = vpop.f32.mrf.mxu0
    %v743 = vadd.f32 0.0, %v742
    %v744 = vpop.f32.mrf.mxu0
    %745 = vdwg.mxu0
    %746 = vmatpush.bf16.msra.mxu0 0
    %747 = vmatpush.bf16.msra.mxu0 0
    %748 = vmatpush.bf16.msra.mxu0 0
    %749 = vmatpush.bf16.msra.mxu0 0
    %750 = vmatpush.bf16.msra.mxu0 0
    %751 = vmatpush.bf16.msra.mxu0 0
    %752 = vmatpush.bf16.msra.mxu0 0
    %753 = vmatpush.bf16.msra.mxu0 %v703
    %754 = vmatmul.bf16.gmra.mxu0 %v694
    %v755 = vpop.f32.mrf.mxu0
    %v756 = vadd.f32 0.0, %v755
    %v757 = vpop.f32.mrf.mxu0
    %758 = vdwg.mxu0
    %759 = vmatpush.bf16.msra.mxu0 0
    %760 = vmatpush.bf16.msra.mxu0 0
    %761 = vmatpush.bf16.msra.mxu0 0
    %762 = vmatpush.bf16.msra.mxu0 0
    %763 = vmatpush.bf16.msra.mxu0 0
    %764 = vmatpush.bf16.msra.mxu0 0
    %765 = vmatpush.bf16.msra.mxu0 0
    %766 = vmatpush.bf16.msra.mxu0 %v706
    %767 = vmatmul.bf16.gmra.mxu0 %v694
    %v768 = vpop.f32.mrf.mxu0
    %v769 = vadd.f32 0.0, %v768
    %v770 = vpop.f32.mrf.mxu0
    %771 = vdwg.mxu0
    %772 = vmatpush.bf16.msra.mxu0 0
    %773 = vmatpush.bf16.msra.mxu0 0
    %774 = vmatpush.bf16.msra.mxu0 0
    %775 = vmatpush.bf16.msra.mxu0 0
    %776 = vmatpush.bf16.msra.mxu0 0
    %777 = vmatpush.bf16.msra.mxu0 0
    %778 = vmatpush.bf16.msra.mxu0 0
    %779 = vmatpush.bf16.msra.mxu0 %v709
    %780 = vmatmul.bf16.gmra.mxu0 %v694
    %v781 = vpop.f32.mrf.mxu0
    %v782 = vadd.f32 0.0, %v781
    %v783 = vpop.f32.mrf.mxu0
    %784 = vdwg.mxu0
    %785 = vmatpush.bf16.msra.mxu0 0
    %786 = vmatpush.bf16.msra.mxu0 0
    %787 = vmatpush.bf16.msra.mxu0 0
    %788 = vmatpush.bf16.msra.mxu0 0
    %789 = vmatpush.bf16.msra.mxu0 0
    %790 = vmatpush.bf16.msra.mxu0 0
    %791 = vmatpush.bf16.msra.mxu0 0
    %792 = vmatpush.bf16.msra.mxu0 %v712
    %793 = vmatmul.bf16.gmra.mxu0 %v694
    %v794 = vpop.f32.mrf.mxu0
    %v795 = vadd.f32 0.0, %v794
    %v796 = vpop.f32.mrf.mxu0
    %797 = vdwg.mxu0
    %798 = vmatpush.bf16.msra.mxu0 0
    %799 = vmatpush.bf16.msra.mxu0 0
    %800 = vmatpush.bf16.msra.mxu0 0
    %801 = vmatpush.bf16.msra.mxu0 0
    %802 = vmatpush.bf16.msra.mxu0 0
    %803 = vmatpush.bf16.msra.mxu0 0
    %804 = vmatpush.bf16.msra.mxu0 0
    %805 = vmatpush.bf16.msra.mxu0 %v715
    %806 = vmatmul.bf16.gmra.mxu0 %v694
    %v807 = vpop.f32.mrf.mxu0
    %v808 = vadd.f32 0.0, %v807
    %v809 = vpop.f32.mrf.mxu0
    %810 = vdwg.mxu0
    %811 = vmatpush.bf16.msra.mxu0 0
    %812 = vmatpush.bf16.msra.mxu0 0
    %813 = vmatpush.bf16.msra.mxu0 0
    %814 = vmatpush.bf16.msra.mxu0 0
    %815 = vmatpush.bf16.msra.mxu0 0
    %816 = vmatpush.bf16.msra.mxu0 0
    %817 = vmatpush.bf16.msra.mxu0 0
    %818 = vmatpush.bf16.msra.mxu0 %v718
    %819 = vmatmul.bf16.gmra.mxu0 %v694
    %v820 = vpop.f32.mrf.mxu0
    %v821 = vadd.f32 0.0, %v820
    %v822 = vpop.f32.mrf.mxu0
    %823 = vdwg.mxu0
    %v824 = vadd.f32 %v590, %v730
    %v825 = vadd.f32 %v603, %v743
    %v826 = vadd.f32 %v616, %v756
    %v827 = vadd.f32 %v629, %v769
    %v828 = vadd.f32 %v642, %v782
    %v829 = vadd.f32 %v655, %v795
    %v830 = vadd.f32 %v668, %v808
    %v831 = vadd.f32 %v681, %v821
    %v832 = vld [vmem:[%s6] sm:$0xf]
    %834 = vset.pattern.permute.xlu0 0
    %835 = vperm.xlu0 %834, %v832
    %v836 = vpop.permute.xlu0 %835
    %v838 = vadd.f32 %v824, %v836
    %v839 = vadd.f32 %v825, %v836
    %v840 = vadd.f32 %v826, %v836
    %v841 = vadd.f32 %v827, %v836
    %v842 = vadd.f32 %v828, %v836
    %v843 = vadd.f32 %v829, %v836
    %v844 = vadd.f32 %v830, %v836
    %v845 = vadd.f32 %v831, %v836
    %v846 = vmax.f32 %v838, 0.0
    %v847 = vmax.f32 %v839, 0.0
    %v848 = vmax.f32 %v840, 0.0
    %v849 = vmax.f32 %v841, 0.0
    %v850 = vmax.f32 %v842, 0.0
    %v851 = vmax.f32 %v843, 0.0
    %v852 = vmax.f32 %v844, 0.0
    %v853 = vmax.f32 %v845, 0.0
    %v854 = vld [vmem:[%s7] sm:$0xf]
    %v855 = vld [vmem:[%s7 + $0x4] sm:$0xf]
    %v856 = vpack.c.bf16 %v846, %v846
    %v857 = vpack.c.bf16 %v847, %v847
    %v858 = vpack.c.bf16 %v848, %v848
    %v859 = vpack.c.bf16 %v849, %v849
    %v860 = vpack.c.bf16 %v850, %v850
    %v861 = vpack.c.bf16 %v851, %v851
    %v862 = vpack.c.bf16 %v852, %v852
    %v863 = vpack.c.bf16 %v853, %v853
    %v864 = vld [vmem:[%s8] sm:$0xf]
    %v865 = vld [vmem:[%s8 + $0x4] sm:$0xf]
    %v868 = vunpack.c.l.b16 %v864
    %v869 = vunpack.c.l.b16 %v865
    %v870 = vpack.c.b16 %v869, %v868
    %v872 = vsel %vm82, %v870, 0
    %874 = vmatpush.bf16.msra.mxu0 0
    %875 = vmatpush.bf16.msra.mxu0 0
    %876 = vmatpush.bf16.msra.mxu0 0
    %877 = vmatpush.bf16.msra.mxu0 0
    %878 = vmatpush.bf16.msra.mxu0 0
    %879 = vmatpush.bf16.msra.mxu0 0
    %880 = vmatpush.bf16.msra.mxu0 0
    %881 = vmatpush.bf16.msra.mxu0 %v88
    %882 = vmatmul.bf16.gmra.mxu0 %v872
    %v883 = vpop.f32.mrf.mxu0
    %v884 = vadd.f32 0.0, %v883
    %v885 = vpop.f32.mrf.mxu0
    %v886 = vadd.f32 0.0, %v885
    %887 = vdwg.mxu0
    %888 = vmatpush.bf16.msra.mxu0 0
    %889 = vmatpush.bf16.msra.mxu0 0
    %890 = vmatpush.bf16.msra.mxu0 0
    %891 = vmatpush.bf16.msra.mxu0 0
    %892 = vmatpush.bf16.msra.mxu0 0
    %893 = vmatpush.bf16.msra.mxu0 0
    %894 = vmatpush.bf16.msra.mxu0 0
    %895 = vmatpush.bf16.msra.mxu0 %v91
    %896 = vmatmul.bf16.gmra.mxu0 %v872
    %v897 = vpop.f32.mrf.mxu0
    %v898 = vadd.f32 0.0, %v897
    %v899 = vpop.f32.mrf.mxu0
    %v900 = vadd.f32 0.0, %v899
    %901 = vdwg.mxu0
    %902 = vmatpush.bf16.msra.mxu0 0
    %903 = vmatpush.bf16.msra.mxu0 0
    %904 = vmatpush.bf16.msra.mxu0 0
    %905 = vmatpush.bf16.msra.mxu0 0
    %906 = vmatpush.bf16.msra.mxu0 0
    %907 = vmatpush.bf16.msra.mxu0 0
    %908 = vmatpush.bf16.msra.mxu0 0
    %909 = vmatpush.bf16.msra.mxu0 %v94
    %910 = vmatmul.bf16.gmra.mxu0 %v872
    %v911 = vpop.f32.mrf.mxu0
    %v912 = vadd.f32 0.0, %v911
    %v913 = vpop.f32.mrf.mxu0
    %v914 = vadd.f32 0.0, %v913
    %915 = vdwg.mxu0
    %916 = vmatpush.bf16.msra.mxu0 0
    %917 = vmatpush.bf16.msra.mxu0 0
    %918 = vmatpush.bf16.msra.mxu0 0
    %919 = vmatpush.bf16.msra.mxu0 0
    %920 = vmatpush.bf16.msra.mxu0 0
    %921 = vmatpush.bf16.msra.mxu0 0
    %922 = vmatpush.bf16.msra.mxu0 0
    %923 = vmatpush.bf16.msra.mxu0 %v97
    %924 = vmatmul.bf16.gmra.mxu0 %v872
    %v925 = vpop.f32.mrf.mxu0
    %v926 = vadd.f32 0.0, %v925
    %v927 = vpop.f32.mrf.mxu0
    %v928 = vadd.f32 0.0, %v927
    %929 = vdwg.mxu0
    %930 = vmatpush.bf16.msra.mxu0 0
    %931 = vmatpush.bf16.msra.mxu0 0
    %932 = vmatpush.bf16.msra.mxu0 0
    %933 = vmatpush.bf16.msra.mxu0 0
    %934 = vmatpush.bf16.msra.mxu0 0
    %935 = vmatpush.bf16.msra.mxu0 0
    %936 = vmatpush.bf16.msra.mxu0 0
    %937 = vmatpush.bf16.msra.mxu0 %v100
    %938 = vmatmul.bf16.gmra.mxu0 %v872
    %v939 = vpop.f32.mrf.mxu0
    %v940 = vadd.f32 0.0, %v939
    %v941 = vpop.f32.mrf.mxu0
    %v942 = vadd.f32 0.0, %v941
    %943 = vdwg.mxu0
    %944 = vmatpush.bf16.msra.mxu0 0
    %945 = vmatpush.bf16.msra.mxu0 0
    %946 = vmatpush.bf16.msra.mxu0 0
    %947 = vmatpush.bf16.msra.mxu0 0
    %948 = vmatpush.bf16.msra.mxu0 0
    %949 = vmatpush.bf16.msra.mxu0 0
    %950 = vmatpush.bf16.msra.mxu0 0
    %951 = vmatpush.bf16.msra.mxu0 %v103
    %952 = vmatmul.bf16.gmra.mxu0 %v872
    %v953 = vpop.f32.mrf.mxu0
    %v954 = vadd.f32 0.0, %v953
    %v955 = vpop.f32.mrf.mxu0
    %v956 = vadd.f32 0.0, %v955
    %957 = vdwg.mxu0
    %958 = vmatpush.bf16.msra.mxu0 0
    %959 = vmatpush.bf16.msra.mxu0 0
    %960 = vmatpush.bf16.msra.mxu0 0
    %961 = vmatpush.bf16.msra.mxu0 0
    %962 = vmatpush.bf16.msra.mxu0 0
    %963 = vmatpush.bf16.msra.mxu0 0
    %964 = vmatpush.bf16.msra.mxu0 0
    %965 = vmatpush.bf16.msra.mxu0 %v106
    %966 = vmatmul.bf16.gmra.mxu0 %v872
    %v967 = vpop.f32.mrf.mxu0
    %v968 = vadd.f32 0.0, %v967
    %v969 = vpop.f32.mrf.mxu0
    %v970 = vadd.f32 0.0, %v969
    %971 = vdwg.mxu0
    %972 = vmatpush.bf16.msra.mxu0 0
    %973 = vmatpush.bf16.msra.mxu0 0
    %974 = vmatpush.bf16.msra.mxu0 0
    %975 = vmatpush.bf16.msra.mxu0 0
    %976 = vmatpush.bf16.msra.mxu0 0
    %977 = vmatpush.bf16.msra.mxu0 0
    %978 = vmatpush.bf16.msra.mxu0 0
    %979 = vmatpush.bf16.msra.mxu0 %v109
    %980 = vmatmul.bf16.gmra.mxu0 %v872
    %v981 = vpop.f32.mrf.mxu0
    %v982 = vadd.f32 0.0, %v981
    %v983 = vpop.f32.mrf.mxu0
    %v984 = vadd.f32 0.0, %v983
    %985 = vdwg.mxu0
    %v988 = vunpack.c.l.b16 %v854
    %v989 = vunpack.c.l.b16 %v855
    %v990 = vpack.c.b16 %v989, %v988
    %v992 = vsel %vm420, %v990, 0
    %v995 = vsel %vm424, %v856, 0
    %v998 = vsel %vm424, %v857, 0
    %v1001 = vsel %vm424, %v858, 0
    %v1004 = vsel %vm424, %v859, 0
    %v1007 = vsel %vm424, %v860, 0
    %v1010 = vsel %vm424, %v861, 0
    %v1013 = vsel %vm424, %v862, 0
    %v1016 = vsel %vm424, %v863, 0
    %1018 = vmatpush.bf16.msra.mxu0 0
    %1019 = vmatpush.bf16.msra.mxu0 0
    %1020 = vmatpush.bf16.msra.mxu0 0
    %1021 = vmatpush.bf16.msra.mxu0 0
    %1022 = vmatpush.bf16.msra.mxu0 0
    %1023 = vmatpush.bf16.msra.mxu0 0
    %1024 = vmatpush.bf16.msra.mxu0 0
    %1025 = vmatpush.bf16.msra.mxu0 %v995
    %1026 = vmatmul.bf16.gmra.mxu0 %v992
    %v1027 = vpop.f32.mrf.mxu0
    %v1028 = vadd.f32 %v884, %v1027
    %v1029 = vpop.f32.mrf.mxu0
    %v1030 = vadd.f32 %v886, %v1029
    %1031 = vdwg.mxu0
    %1032 = vmatpush.bf16.msra.mxu0 0
    %1033 = vmatpush.bf16.msra.mxu0 0
    %1034 = vmatpush.bf16.msra.mxu0 0
    %1035 = vmatpush.bf16.msra.mxu0 0
    %1036 = vmatpush.bf16.msra.mxu0 0
    %1037 = vmatpush.bf16.msra.mxu0 0
    %1038 = vmatpush.bf16.msra.mxu0 0
    %1039 = vmatpush.bf16.msra.mxu0 %v998
    %1040 = vmatmul.bf16.gmra.mxu0 %v992
    %v1041 = vpop.f32.mrf.mxu0
    %v1042 = vadd.f32 %v898, %v1041
    %v1043 = vpop.f32.mrf.mxu0
    %v1044 = vadd.f32 %v900, %v1043
    %1045 = vdwg.mxu0
    %1046 = vmatpush.bf16.msra.mxu0 0
    %1047 = vmatpush.bf16.msra.mxu0 0
    %1048 = vmatpush.bf16.msra.mxu0 0
    %1049 = vmatpush.bf16.msra.mxu0 0
    %1050 = vmatpush.bf16.msra.mxu0 0
    %1051 = vmatpush.bf16.msra.mxu0 0
    %1052 = vmatpush.bf16.msra.mxu0 0
    %1053 = vmatpush.bf16.msra.mxu0 %v1001
    %1054 = vmatmul.bf16.gmra.mxu0 %v992
    %v1055 = vpop.f32.mrf.mxu0
    %v1056 = vadd.f32 %v912, %v1055
    %v1057 = vpop.f32.mrf.mxu0
    %v1058 = vadd.f32 %v914, %v1057
    %1059 = vdwg.mxu0
    %1060 = vmatpush.bf16.msra.mxu0 0
    %1061 = vmatpush.bf16.msra.mxu0 0
    %1062 = vmatpush.bf16.msra.mxu0 0
    %1063 = vmatpush.bf16.msra.mxu0 0
    %1064 = vmatpush.bf16.msra.mxu0 0
    %1065 = vmatpush.bf16.msra.mxu0 0
    %1066 = vmatpush.bf16.msra.mxu0 0
    %1067 = vmatpush.bf16.msra.mxu0 %v1004
    %1068 = vmatmul.bf16.gmra.mxu0 %v992
    %v1069 = vpop.f32.mrf.mxu0
    %v1070 = vadd.f32 %v926, %v1069
    %v1071 = vpop.f32.mrf.mxu0
    %v1072 = vadd.f32 %v928, %v1071
    %1073 = vdwg.mxu0
    %1074 = vmatpush.bf16.msra.mxu0 0
    %1075 = vmatpush.bf16.msra.mxu0 0
    %1076 = vmatpush.bf16.msra.mxu0 0
    %1077 = vmatpush.bf16.msra.mxu0 0
    %1078 = vmatpush.bf16.msra.mxu0 0
    %1079 = vmatpush.bf16.msra.mxu0 0
    %1080 = vmatpush.bf16.msra.mxu0 0
    %1081 = vmatpush.bf16.msra.mxu0 %v1007
    %1082 = vmatmul.bf16.gmra.mxu0 %v992
    %v1083 = vpop.f32.mrf.mxu0
    %v1084 = vadd.f32 %v940, %v1083
    %v1085 = vpop.f32.mrf.mxu0
    %v1086 = vadd.f32 %v942, %v1085
    %1087 = vdwg.mxu0
    %1088 = vmatpush.bf16.msra.mxu0 0
    %1089 = vmatpush.bf16.msra.mxu0 0
    %1090 = vmatpush.bf16.msra.mxu0 0
    %1091 = vmatpush.bf16.msra.mxu0 0
    %1092 = vmatpush.bf16.msra.mxu0 0
    %1093 = vmatpush.bf16.msra.mxu0 0
    %1094 = vmatpush.bf16.msra.mxu0 0
    %1095 = vmatpush.bf16.msra.mxu0 %v1010
    %1096 = vmatmul.bf16.gmra.mxu0 %v992
    %v1097 = vpop.f32.mrf.mxu0
    %v1098 = vadd.f32 %v954, %v1097
    %v1099 = vpop.f32.mrf.mxu0
    %v1100 = vadd.f32 %v956, %v1099
    %1101 = vdwg.mxu0
    %1102 = vmatpush.bf16.msra.mxu0 0
    %1103 = vmatpush.bf16.msra.mxu0 0
    %1104 = vmatpush.bf16.msra.mxu0 0
    %1105 = vmatpush.bf16.msra.mxu0 0
    %1106 = vmatpush.bf16.msra.mxu0 0
    %1107 = vmatpush.bf16.msra.mxu0 0
    %1108 = vmatpush.bf16.msra.mxu0 0
    %1109 = vmatpush.bf16.msra.mxu0 %v1013
    %1110 = vmatmul.bf16.gmra.mxu0 %v992
    %v1111 = vpop.f32.mrf.mxu0
    %v1112 = vadd.f32 %v968, %v1111
    %v1113 = vpop.f32.mrf.mxu0
    %v1114 = vadd.f32 %v970, %v1113
    %1115 = vdwg.mxu0
    %1116 = vmatpush.bf16.msra.mxu0 0
    %1117 = vmatpush.bf16.msra.mxu0 0
    %1118 = vmatpush.bf16.msra.mxu0 0
    %1119 = vmatpush.bf16.msra.mxu0 0
    %1120 = vmatpush.bf16.msra.mxu0 0
    %1121 = vmatpush.bf16.msra.mxu0 0
    %1122 = vmatpush.bf16.msra.mxu0 0
    %1123 = vmatpush.bf16.msra.mxu0 %v1016
    %1124 = vmatmul.bf16.gmra.mxu0 %v992
    %v1125 = vpop.f32.mrf.mxu0
    %v1126 = vadd.f32 %v982, %v1125
    %v1127 = vpop.f32.mrf.mxu0
    %v1128 = vadd.f32 %v984, %v1127
    %1129 = vdwg.mxu0
    %v1130 = vld [vmem:[%s9] sm:$0xff]
    %v1131 = vld [vmem:[%s9 + $0x8] sm:$0xff]
    %1133 = vset.pattern.permute.xlu0 0
    %1134 = vperm.xlu0 %1133, %v1130
    %v1135 = vpop.permute.xlu0 %1134
    %1138 = vset.pattern.permute.xlu0 0
    %1139 = vperm.xlu0 %1138, %v1131
    %v1140 = vpop.permute.xlu0 %1139
    %v1142 = vadd.f32 %v1028, %v1135
    %v1143 = vadd.f32 %v1042, %v1135
    %v1144 = vadd.f32 %v1056, %v1135
    %v1145 = vadd.f32 %v1070, %v1135
    %v1146 = vadd.f32 %v1084, %v1135
    %v1147 = vadd.f32 %v1098, %v1135
    %v1148 = vadd.f32 %v1112, %v1135
    %v1149 = vadd.f32 %v1126, %v1135
    %v1150 = vadd.f32 %v1030, %v1140
    %v1151 = vadd.f32 %v1044, %v1140
    %v1152 = vadd.f32 %v1058, %v1140
    %v1153 = vadd.f32 %v1072, %v1140
    %v1154 = vadd.f32 %v1086, %v1140
    %v1155 = vadd.f32 %v1100, %v1140
    %v1156 = vadd.f32 %v1114, %v1140
    %v1157 = vadd.f32 %v1128, %v1140
    %v1158 = vmax.f32 %v1142, 0.0
    %v1159 = vmax.f32 %v1143, 0.0
    %v1160 = vmax.f32 %v1144, 0.0
    %v1161 = vmax.f32 %v1145, 0.0
    %v1162 = vmax.f32 %v1146, 0.0
    %v1163 = vmax.f32 %v1147, 0.0
    %v1164 = vmax.f32 %v1148, 0.0
    %v1165 = vmax.f32 %v1149, 0.0
    %v1166 = vmax.f32 %v1150, 0.0
    %v1167 = vmax.f32 %v1151, 0.0
    %v1168 = vmax.f32 %v1152, 0.0
    %v1169 = vmax.f32 %v1153, 0.0
    %v1170 = vmax.f32 %v1154, 0.0
    %v1171 = vmax.f32 %v1155, 0.0
    %v1172 = vmax.f32 %v1156, 0.0
    %v1173 = vmax.f32 %v1157, 0.0
    %1174 = vst [vmem:[#allocation5] sm:$0xff] %v1158
    %1175 = vst [vmem:[#allocation5 + $0x8] sm:$0xff] %v1159
    %1176 = vst [vmem:[#allocation5 + $0x10] sm:$0xff] %v1160
    %1177 = vst [vmem:[#allocation5 + $0x18] sm:$0xff] %v1161
    %1178 = vst [vmem:[#allocation5 + $0x20] sm:$0xff] %v1162
    %1179 = vst [vmem:[#allocation5 + $0x28] sm:$0xff] %v1163
    %1180 = vst [vmem:[#allocation5 + $0x30] sm:$0xff] %v1164
    %1181 = vst [vmem:[#allocation5 + $0x38] sm:$0xff] %v1165
    %1182 = vst [vmem:[#allocation5 + $0x40] sm:$0xff] %v1166
    %1183 = vst [vmem:[#allocation5 + $0x48] sm:$0xff] %v1167
    %1184 = vst [vmem:[#allocation5 + $0x50] sm:$0xff] %v1168
    %1185 = vst [vmem:[#allocation5 + $0x58] sm:$0xff] %v1169
    %1186 = vst [vmem:[#allocation5 + $0x60] sm:$0xff] %v1170
    %1187 = vst [vmem:[#allocation5 + $0x68] sm:$0xff] %v1171
    %1188 = vst [vmem:[#allocation5 + $0x70] sm:$0xff] %v1172
    %1189 = vst [vmem:[#allocation5 + $0x78] sm:$0xff] %v1173
    // Predicated region
    $region46: #{tpu_custom_call.1} parent=1 // pred_check
      _
    $region47: #{tpu_custom_call.1} parent=1 // pred_check_branch
      %1191 = sbr.rel (0) target = $region49
    $region48: #{tpu_custom_call.1} parent=1 // pred_region
      %1193 = vsyncadd [#allocation4], 0
      %s1194 = sshll.u32 [#allocation5], 4
      %s1195 = int_to_ptr.vmem [resolvable:$true] %s1194
      %s1196 = sshll.u32 %s10, 4
      %s1197 = int_to_ptr.hbm [resolvable:$true] %s1196
      %1202 = dma.vmem_to_hbm [thread:$0]  %s1195, 2048, %s1197, [#allocation4], 1024, 1024, 64
    $region49: #{tpu_custom_call.1} parent=1 // pred_fallthru
      _
    // Predicated region
    $region50: #{tpu_custom_call.1} parent=1 // pred_check
      _
    $region51: #{tpu_custom_call.1} parent=1 // pred_check_branch
      %1204 = sbr.rel (0) target = $region53
    $region52: #{tpu_custom_call.1} parent=1 // pred_region
      %1206 = dma.done [#allocation4], 2048
    $region53: #{tpu_custom_call.1} parent=1 // pred_fallthru
      _
    %1207 = vsyncpa [#allocation3], 1
    %1208 = vsyncpa [#allocation4], 1

</llo_original>
